<compile_context>
chip_gen: v7x
topology: tpu7x:2x2x1
jax: 0.10.0
libtpu: 0.0.40
codegen_flags: <defaults>
</compile_context>

<pallas_src>
import numpy as np
import jax
import jax.numpy as jnp
from jax import lax
from jax.experimental import pallas as pl
from jax.experimental.pallas import tpu as pltpu


# ----------------------------------------------------------------------------
# One-time probe for pltpu.roll's rotation direction, so the reflect-pad index
# arithmetic is correct regardless of the backend's rotate convention.
# ----------------------------------------------------------------------------
_ROLL_NP_STYLE = None


def _roll_is_np_style():
    """True iff pltpu.roll(x, s, ax) == jnp.roll(x, s, ax), i.e. out[i]=x[i-s]."""
    global _ROLL_NP_STYLE
    if _ROLL_NP_STYLE is None:
        def probe(x_ref, o_ref):
            o_ref[...] = pltpu.roll(x_ref[...], 1, 1)

        x = jnp.broadcast_to(lax.iota(jnp.float32, 128), (8, 128))
        y = pl.pallas_call(
            probe, out_shape=jax.ShapeDtypeStruct((8, 128), jnp.float32))(x)
        _ROLL_NP_STYLE = bool(float(y[0, 0]) == 127.0)
    return _ROLL_NP_STYLE


# ----------------------------------------------------------------------------
# Kernel
# ----------------------------------------------------------------------------
def _make_kernel(H, W, C, perm, roll_np_style):
    HW = H * W

    def rollm(a, k):
        """result[..., p] = a[..., (p - k) % HW]  (np.roll-by-k semantics)."""
        amt = k % HW if roll_np_style else (HW - k) % HW
        return pltpu.roll(a, amt, 1)

    def build_taps(a, row0, rowl, col0, coll):
        """(C, HW) -> (9*C, HW) reflect-padded 3x3 taps; tap index = ky*3+kx."""
        taps = []
        for dy in (-1, 0, 1):
            if dy == 0:
                ay = a
            else:
                prev_row = rollm(a, W)        # x[row-1]  (valid for row >= 1)
                next_row = rollm(a, HW - W)   # x[row+1]  (valid for row <= H-2)
                if dy == -1:                  # need x[reflect(row-1)]
                    ay = jnp.where(row0, next_row, prev_row)
                else:                         # need x[reflect(row+1)]
                    ay = jnp.where(rowl, prev_row, next_row)
            for dx in (-1, 0, 1):
                if dx == 0:
                    t = ay
                else:
                    prev_col = rollm(ay, 1)        # x[col-1] (valid for col >= 1)
                    next_col = rollm(ay, HW - 1)   # x[col+1] (valid for col <= W-2)
                    if dx == -1:
                        t = jnp.where(col0, next_col, prev_col)
                    else:
                        t = jnp.where(coll, prev_col, next_col)
                taps.append(t)
        return jnp.concatenate(taps, axis=0).astype(jnp.bfloat16)

    def kernel(x_ref, w1_ref, w2_ref, p_ref, m_ref, out_ref):
        x = x_ref[0]                                        # (C, HW) f32
        p = p_ref[...]                                      # (C, 8)  f32
        b_a, s_b, b_b = p[:, 0:1], p[:, 1:2], p[:, 2:3]
        b_c, s_d, b_d = p[:, 3:4], p[:, 4:5], p[:, 5:6]

        m = m_ref[...]                                      # (8, HW) f32
        row0, rowl, col0, coll = (
            jnp.broadcast_to(m[k:k + 1, :] > 0.5, (C, HW)) for k in range(4))

        # block 1: reflect-pad -> conv1 (BN scale folded) -> +bias -> ReLU
        #          -> norm1 affine -> ReLU
        t1 = jnp.dot(w1_ref[...], build_taps(x, row0, rowl, col0, coll),
                     preferred_element_type=jnp.float32)    # (C, HW)
        y = jnp.maximum(t1 + b_a, 0.0)
        y = jnp.maximum(y * s_b + b_b, 0.0)

        # block 2: reflect-pad -> conv2 (BN scale folded, output channels
        #          pre-shuffled) -> +bias -> ReLU -> norm2 affine
        t2 = jnp.dot(w2_ref[...], build_taps(y, row0, rowl, col0, coll),
                     preferred_element_type=jnp.float32)
        z = jnp.maximum(t2 + b_c, 0.0) * s_d + b_d

        # residual (channel-shuffled to match the folded shuffle) + final ReLU
        x_sh = jnp.concatenate([x[c:c + 1, :] for c in perm], axis=0)
        out_ref[0] = jnp.maximum(z + x_sh, 0.0)

    return kernel


def res_shuffle_layer(x_nchw, params):
    """Pallas implementation of ResShuffleLayer.forward (inference-mode BN)."""
    B, C, H, W = x_nchw.shape
    HW = H * W
    perm = params["perm"]
    x = x_nchw.reshape(B, C, HW)                 # contiguous, no data movement
    kernel = _make_kernel(H, W, C, perm, _roll_is_np_style())
    out = pl.pallas_call(
        kernel,
        out_shape=jax.ShapeDtypeStruct((B, C, HW), jnp.float32),
        grid_spec=pltpu.PrefetchScalarGridSpec(
            num_scalar_prefetch=0,
            grid=(B,),
            in_specs=[
                pl.BlockSpec((1, C, HW), lambda b: (b, 0, 0)),
                pl.BlockSpec((C, 9 * C), lambda b: (0, 0)),
                pl.BlockSpec((C, 9 * C), lambda b: (0, 0)),
                pl.BlockSpec((C, 8), lambda b: (0, 0)),
                pl.BlockSpec((8, HW), lambda b: (0, 0)),
            ],
            out_specs=pl.BlockSpec((1, C, HW), lambda b: (b, 0, 0)),
        ),
        compiler_params=pltpu.CompilerParams(
            dimension_semantics=("parallel",)),
    )(x, params["w1"], params["w2"], params["pvec"], params["masks"])
    return out.reshape(B, C, H, W)


# ----------------------------------------------------------------------------
# Parameter preparation (all folding happens here, off the hot path)
# ----------------------------------------------------------------------------
def fold_bn(gamma, beta, mean, var, eps=1e-5):
    scale = gamma / jnp.sqrt(var + eps)
    bias = beta - mean * scale
    return scale, bias


def grouped_to_dense(wg, groups):
    """torch grouped conv weight (O, I/g, 3, 3) -> dense block-diagonal (O, I, 3, 3)."""
    O, I_g, kh, kw = wg.shape
    og = O // groups
    dense = jnp.zeros((O, I_g * groups, kh, kw), wg.dtype)
    for g in range(groups):
        dense = dense.at[g * og:(g + 1) * og, g * I_g:(g + 1) * I_g].set(
            wg[g * og:(g + 1) * og])
    return dense


def conv_to_taps(dense):
    """(O, I, 3, 3) -> (O, 9*I); column index = (ky*3 + kx) * I + i."""
    O, I = dense.shape[:2]
    return jnp.transpose(dense, (0, 2, 3, 1)).reshape(O, 9 * I)


def shuffle_perm(C, groups):
    """out[:, o] = in[:, perm[o]] for shuffle_v1."""
    gc = C // groups
    return [(o % gc) * groups + (o // gc) for o in range(C)]


def _boundary_masks(H, W):
    HW = H * W
    row = np.arange(HW) // W
    col = np.arange(HW) % W
    m = np.zeros((8, HW), np.float32)
    m[0] = (row == 0)
    m[1] = (row == H - 1)
    m[2] = (col == 0)
    m[3] = (col == W - 1)
    return jnp.asarray(m)


def prep_params(wg1, wg2, bn_a, bn_b, bn_c, bn_d, groups, H, W):
    C = wg1.shape[0]
    s_a, b_a = bn_a
    s_b, b_b = bn_b
    s_c, b_c = bn_c
    s_d, b_d = bn_d
    perm = shuffle_perm(C, groups)
    pidx = jnp.asarray(perm)
    # Fold the conv-side BN scales into the weights; fold the channel shuffle
    # into conv2's output-channel order (and its per-channel params).
    w1 = (conv_to_taps(grouped_to_dense(wg1, groups)) * s_a[:, None])
    w2 = (conv_to_taps(grouped_to_dense(wg2, groups)) * s_c[:, None])[pidx, :]
    pvec = jnp.zeros((C, 8), jnp.float32)
    pvec = pvec.at[:, 0].set(b_a).at[:, 1].set(s_b).at[:, 2].set(b_b)
    pvec = pvec.at[:, 3].set(b_c[pidx]).at[:, 4].set(s_d[pidx]).at[:, 5].set(b_d[pidx])
    return dict(
        w1=w1.astype(jnp.bfloat16),
        w2=w2.astype(jnp.bfloat16),
        pvec=pvec,
        masks=_boundary_masks(H, W),
        perm=perm,
    )


# ----------------------------------------------------------------------------
# Pure-JAX reference (f32, HIGHEST precision) for the correctness check
# ----------------------------------------------------------------------------
def shuffle_v1_ref(x, group):
    B, C, H, W = x.shape
    gc = C // group
    return x.reshape(B, gc, group, H, W).transpose(0, 2, 1, 3, 4).reshape(B, C, H, W)


def _ref_conv(x, wg, groups):
    xp = jnp.pad(x, ((0, 0), (0, 0), (1, 1), (1, 1)), mode="reflect")
    return lax.conv_general_dilated(
        xp, wg, (1, 1), "VALID",
        dimension_numbers=("NCHW", "OIHW", "NCHW"),
        feature_group_count=groups,
        precision=lax.Precision.HIGHEST)


def res_shuffle_layer_ref(x, wg1, wg2, bn_a, bn_b, bn_c, bn_d, groups):
    def aff(y, sb):
        s, b = sb
        return y * s[None, :, None, None] + b[None, :, None, None]

    y = jnp.maximum(aff(_ref_conv(x, wg1, groups), bn_a), 0.0)
    y = jnp.maximum(aff(y, bn_b), 0.0)
    z = jnp.maximum(aff(_ref_conv(y, wg2, groups), bn_c), 0.0)
    z = aff(z, bn_d)
    return shuffle_v1_ref(jnp.maximum(z + x, 0.0), groups)


# ----------------------------------------------------------------------------
# Main
# ----------------------------------------------------------------------------
if __name__ == "__main__":
    B, C, H, W = 2, 8, 16, 16
    groups = 2                       # channels % groups == 0
    key = jax.random.PRNGKey(0)
    ks = jax.random.split(key, 8)

    x = jax.random.normal(ks[0], (B, C, H, W), jnp.float32)

    # Conv weights (torch layout: (out, in/groups, kh, kw), bias=False)
    wg1 = 0.1 * jax.random.normal(ks[1], (C, C // groups, 3, 3), jnp.float32)
    wg2 = 0.1 * jax.random.normal(ks[2], (C, C // groups, 3, 3), jnp.float32)

    def bn_params(k):
        k1, k2, k3, k4 = jax.random.split(k, 4)
        gamma = 1.0 + 0.1 * jax.random.normal(k1, (C,), jnp.float32)
        beta = 0.1 * jax.random.normal(k2, (C,), jnp.float32)
        mean = 0.1 * jax.random.normal(k3, (C,), jnp.float32)
        var = 1.0 + 0.1 * jax.random.uniform(k4, (C,), jnp.float32)
        return fold_bn(gamma, beta, mean, var)

    bn_a = bn_params(ks[3])          # BN inside conv1's ConvBNReLU
    bn_b = bn_params(ks[4])          # norm1
    bn_c = bn_params(ks[5])          # BN inside conv2's ConvBNReLU
    bn_d = bn_params(ks[6])          # norm2

    params = prep_params(wg1, wg2, bn_a, bn_b, bn_c, bn_d, groups, H, W)

    out = jax.block_until_ready(res_shuffle_layer(x, params))
    ref = jax.block_until_ready(
        res_shuffle_layer_ref(x, wg1, wg2, bn_a, bn_b, bn_c, bn_d, groups))

    assert out.shape == (B, C, H, W) and out.dtype == jnp.float32
    max_err = float(jnp.max(jnp.abs(out - ref)))
    # kernel matmuls use bf16 operands (single MXU pass) vs f32 HIGHEST reference
    assert jnp.allclose(out, ref, rtol=2e-2, atol=2e-2), max_err
    print("KERNEL_OK")
</pallas_src>

<mosaic_0001>
module attributes {stable_mosaic.version = 11 : i64} {
  func.func @probe(%arg0: memref<8x128xf32, #tpu.memory_space<vmem>>, %arg1: memref<8x128xf32, #tpu.memory_space<vmem>>) attributes {dimension_semantics = [], scalar_prefetch = 0 : i64, scratch_operands = 0 : i64, tpu.core_type = #tpu.core_type<tc>} {
    %c0 = arith.constant 0 : index
    %c0_0 = arith.constant 0 : index
    %0 = vector.load %arg0[%c0, %c0_0] : memref<8x128xf32, #tpu.memory_space<vmem>>, vector<8x128xf32>
    %c1_i32 = arith.constant 1 : i32
    %1 = tpu.dynamic_rotate %0 by %c1_i32 dim 1 : vector<8x128xf32>, i32 -> vector<8x128xf32>
    %c0_1 = arith.constant 0 : index
    %c0_2 = arith.constant 0 : index
    %2 = vector.load %arg1[%c0_1, %c0_2] : memref<8x128xf32, #tpu.memory_space<vmem>>, vector<8x128xf32>
    tpu.vector_store %arg1[%c0_1, %c0_2], %1 {strides = array<i32>} : memref<8x128xf32, #tpu.memory_space<vmem>>, vector<8x128xf32>,
    return
  }
}

</mosaic_0001>

<llo_original>
// kernel: tpu_custom_call.1
$region0: #{tpu_custom_call.1}
  #allocation0 [shape = 'u32[]', space=smem, size = 0x4, offset = 0x4, fixed_abs, tag = 'smem constant byte address 0x4 - core index']
  #allocation1 [shape = 'u32[144,128]{1,0:T(1,128)}', space=vmem, size = 0x12000, scoped, tag = 'internal scratch']
  %s0 = inlined_call_operand.hbm [shape: f32[8,128], index: 0, kind: input, shape index: {}]
  %s1 = inlined_call_operand.hbm [shape: f32[8,128], index: 1, kind: output, shape index: {}]
  %s2 = sld [smem:[#allocation0]]
  $region18: #{tpu_custom_call.1} parent=0
    _
  %s4 = ssub.s32 1, %s2
  %s5 = scalar_select 0, %s4, %s2
  $region1: #{tpu_custom_call.1} parent=0
    #allocation2 [shape = 'u8[4096]{0}', space=vmem, size = 0x1000, scoped, tag = 'input window, operand 0, single buffered']
    #allocation3 [shape = 's32[1]{0}', space=sflag, size = 0x4, scoped, tag = 'scoped memory for tpu_custom_call.1']
    #allocation4 [shape = 's32[1]{0}', space=sflag, size = 0x4, scoped, tag = 'scoped memory for tpu_custom_call.1']
    #allocation5 [shape = 'u8[4096]{0}', space=vmem, size = 0x1000, scoped, tag = 'output window, operand 0, single buffered']
    %6 = vsyncpa [#allocation3], 0
    %7 = vsyncpa [#allocation4], 0
    // Predicated region
    $region2: #{tpu_custom_call.1} parent=1 // pred_check
      _
    $region3: #{tpu_custom_call.1} parent=1 // pred_check_branch
      %9 = sbr.rel (0) target = $region5
    $region4: #{tpu_custom_call.1} parent=1 // pred_region
      %s11 = ssub.s32 128, 128
      %12 = vsyncadd [#allocation3], %s11
      %s14 = sshll.u32 [#allocation2], 4
      %s15 = int_to_ptr.vmem [resolvable:$true] %s14
      %17 = dma.hbm_to_vmem [thread:$0]  %s0, 128, %s15, [#allocation3]
    $region5: #{tpu_custom_call.1} parent=1 // pred_fallthru
      _
    // Predicated region
    $region6: #{tpu_custom_call.1} parent=1 // pred_check
      _
    $region7: #{tpu_custom_call.1} parent=1 // pred_check_branch
      %19 = sbr.rel (0) target = $region9
    $region8: #{tpu_custom_call.1} parent=1 // pred_region
      %20 = dma.done [#allocation3], 128
    $region9: #{tpu_custom_call.1} parent=1 // pred_fallthru
      _
    %v21 = vld [vmem:[#allocation2] sm:$0xff]
    %22 = vrot.lane.b32.xlu0 %v21, 1
    %v23 = vpop.permute.xlu0 %22
    %24 = vst [vmem:[#allocation5] sm:$0xff] %v23
    // Predicated region
    $region10: #{tpu_custom_call.1} parent=1 // pred_check
      _
    $region11: #{tpu_custom_call.1} parent=1 // pred_check_branch
      %26 = sbr.rel (0) target = $region13
    $region12: #{tpu_custom_call.1} parent=1 // pred_region
      %s28 = ssub.s32 128, 128
      %29 = vsyncadd [#allocation4], %s28
      %s31 = sshll.u32 [#allocation5], 4
      %s32 = int_to_ptr.vmem [resolvable:$true] %s31
      %34 = dma.vmem_to_hbm [thread:$0]  %s32, 128, %s1, [#allocation4]
    $region13: #{tpu_custom_call.1} parent=1 // pred_fallthru
      _
    // Predicated region
    $region14: #{tpu_custom_call.1} parent=1 // pred_check
      _
    $region15: #{tpu_custom_call.1} parent=1 // pred_check_branch
      %36 = sbr.rel (0) target = $region17
    $region16: #{tpu_custom_call.1} parent=1 // pred_region
      %37 = dma.done [#allocation4], 128
    $region17: #{tpu_custom_call.1} parent=1 // pred_fallthru
      _
    %38 = vsyncpa [#allocation3], 1
    %39 = vsyncpa [#allocation4], 1

</llo_original>
